<compile_context>
chip_gen: v5e
topology: v5e:2x2
jax: 0.10.0
libtpu: 0.0.40
codegen_flags: <defaults>
</compile_context>

<pallas_src>
import functools
import math

import jax
import jax.numpy as jnp
from jax import lax
from jax.experimental import pallas as pl
from jax.experimental.pallas import tpu as pltpu


def _round_up(x: int, m: int) -> int:
    return ((x + m - 1) // m) * m


_TM_CANDIDATES = (1024, 512, 256, 128, 64, 32, 16, 8)
_TF_CANDIDATES = (2048, 1024, 512, 256, 128)
_HEADROOM = 8 * 1024 * 1024  # slack for Mosaic internal scratch


def _vmem_budget():
    """Returns (usable buffer budget, physical VMEM capacity) in bytes."""
    try:
        cap = int(pltpu.get_tpu_info().vmem_capacity_bytes)
    except Exception:
        cap = 64 * 1024 * 1024                       # conservative (v7x-sized) fallback
    budget = max(cap - _HEADROOM, 16 * 1024 * 1024)
    budget = min(budget, 100 * 1024 * 1024)          # don't hog all of a 128 MiB core
    return budget, cap


def _block_spec(shape, index_map, buffers=None):
    """BlockSpec with an optional explicit buffer count (graceful fallback)."""
    if buffers is not None and hasattr(pl, "Buffered"):
        try:
            return pl.BlockSpec(shape, index_map, pipeline_mode=pl.Buffered(buffers))
        except Exception:
            pass
    return pl.BlockSpec(shape, index_map)


def _gelu_erf_f32(h):
    # Exact GeLU: h * 0.5 * (1 + erf(h / sqrt(2))), computed in f32.
    return h * (0.5 * (1.0 + lax.erf(h * jnp.float32(0.7071067811865476))))


def _ffn_resident_kernel(x_ref, w1_ref, w2_ref, o_ref, *, precision):
    # Weights resident in VMEM; grid is only over row tiles.
    h = jnp.dot(x_ref[...], w1_ref[...], precision=precision,
                preferred_element_type=jnp.float32)
    h = _gelu_erf_f32(h)
    o_ref[...] = jnp.dot(h.astype(w2_ref.dtype), w2_ref[...], precision=precision,
                         preferred_element_type=jnp.float32).astype(o_ref.dtype)


def _ffn_streaming_kernel(x_ref, w1_ref, w2_ref, o_ref, acc_ref, *, precision):
    # grid = (row tiles, d_ff chunks); x / out / acc resident across the k axis.
    k = pl.program_id(1)

    h = jnp.dot(x_ref[...], w1_ref[...], precision=precision,
                preferred_element_type=jnp.float32)
    h = _gelu_erf_f32(h)
    part = jnp.dot(h.astype(w2_ref.dtype), w2_ref[...], precision=precision,
                   preferred_element_type=jnp.float32)

    @pl.when(k == 0)
    def _():
        acc_ref[...] = part                       # direct write: no zero-fill + re-read

    @pl.when(k > 0)
    def _():
        acc_ref[...] = acc_ref[...] + part

    @pl.when(k == pl.num_programs(1) - 1)
    def _():
        o_ref[...] = acc_ref[...].astype(o_ref.dtype)


def _balance_rows(tm: int, m_need: int) -> int:
    # Prefer >= 2 row tiles so the 'parallel' axis can feed both v7x TensorCores.
    if tm >= m_need >= 512 and tm >= 256:
        return tm // 2
    return tm


def _pick_resident_tm(m_need, d_model, f_pad, xi, wi, oi, row_align, budget):
    w_bytes = 2 * d_model * f_pad * wi               # W1^T + W2^T, single-buffered
    if w_bytes > budget // 2:
        return None
    # double-buffered x and out row tiles + f32 hidden activations (+ cast slack)
    per_row = 2 * d_model * xi + 2 * d_model * oi + f_pad * (8 + wi)
    avail = budget - w_bytes
    for tm in _TM_CANDIDATES:
        if tm % row_align or tm > m_need:
            continue
        if tm * per_row <= avail:
            if tm < min(m_need, 128):
                return None                          # weights fit but row tiles too small
            return _balance_rows(tm, m_need)
    return None


def _pick_streaming_tiles(m_need, d_model, f_need, xi, wi, oi, row_align, budget):
    for tm in _TM_CANDIDATES:
        if tm % row_align or tm > m_need:
            continue
        fixed = tm * d_model * (xi + oi + 4)         # x(1-buf) + out(1-buf) + f32 acc
        for tf in _TF_CANDIDATES:
            if tf > f_need:
                continue
            stream = 4 * d_model * tf * wi           # W1^T + W2^T chunks, 2 buffers each
            inter = tm * tf * (8 + wi)               # f32 hidden temporaries + cast
            if fixed + stream + inter <= budget:
                return _balance_rows(tm, m_need), tf
    return row_align, 128                            # last resort


@functools.partial(jax.jit, static_argnames=("precision", "_force_streaming"))
def feed_forward(x, w1, w2, *, precision="highest", _force_streaming=False):
    """FeedForward forward pass: linear2(GeLU(linear1(x))), no biases.

    x : (..., d_model)
    w1: (d_ff, d_model)   -- linear1.weight as stored by torch.nn.Linear
    w2: (d_model, d_ff)   -- linear2.weight as stored by torch.nn.Linear

    `precision` applies to the MXU matmuls ("highest" matches the f32 torch
    reference and is a no-op for bf16 inputs).
    """
    *lead, d_model = x.shape
    d_ff = w1.shape[0]
    assert w1.shape == (d_ff, d_model) and w2.shape == (d_model, d_ff)

    M = math.prod(lead)
    if M == 0:
        return jnp.zeros((*lead, d_model), dtype=x.dtype)

    x2d = x.reshape(M, d_model)

    xi = jnp.dtype(x.dtype).itemsize
    wi = jnp.dtype(w1.dtype).itemsize
    oi = xi
    row_align = max(8, 32 // xi)                     # 8 rows f32, 16 bf16, 32 int8/fp8

    budget, vmem_cap = _vmem_budget()
    m_need = _round_up(M, row_align)
    f_need = _round_up(d_ff, 128)

    # One-time transposes: both kernel matmuls then contract the RHS major
    # (sublane) dim, the natural MXU layout. (Pass weights pre-transposed in a
    # real model to amortize even this.)
    w1t = jnp.transpose(w1)                          # (d_model, d_ff)
    w2t = jnp.transpose(w2)                          # (d_ff, d_model)

    tm_resident = None if _force_streaming else _pick_resident_tm(
        m_need, d_model, f_need, xi, wi, oi, row_align, budget)

    if tm_resident is not None:
        tm, tf = tm_resident, f_need
        f_pad = f_need
    else:
        tm, tf = _pick_streaming_tiles(m_need, d_model, f_need, xi, wi, oi,
                                       row_align, budget)
        f_pad = _round_up(d_ff, tf)

    m_pad = _round_up(M, tm)

    # Zero padding is exact: zero rows give zero outputs; zero d_ff columns
    # contribute GeLU(0) = 0 to the second matmul.
    if m_pad != M:
        x2d = jnp.pad(x2d, ((0, m_pad - M), (0, 0)))
    if f_pad != d_ff:
        w1t = jnp.pad(w1t, ((0, 0), (0, f_pad - d_ff)))
        w2t = jnp.pad(w2t, ((0, f_pad - d_ff), (0, 0)))

    grid_m = m_pad // tm

    if tm_resident is not None:
        est_bytes = (2 * d_model * f_pad * wi
                     + tm * (2 * d_model * xi + 2 * d_model * oi + f_pad * (8 + wi)))
        weight_hbm_bytes = 2 * d_model * f_pad * wi
        grid = (grid_m,)
        in_specs = [
            _block_spec((tm, d_model), lambda i: (i, 0)),                  # x rows
            _block_spec((d_model, f_pad), lambda i: (0, 0), buffers=1),    # W1^T resident
            _block_spec((f_pad, d_model), lambda i: (0, 0), buffers=1),    # W2^T resident
        ]
        out_specs = _block_spec((tm, d_model), lambda i: (i, 0))
        scratch_shapes = []
        kernel = functools.partial(_ffn_resident_kernel, precision=precision)
        dim_sem = ("parallel",)
    else:
        est_bytes = (tm * d_model * (xi + oi + 4)
                     + 4 * d_model * tf * wi
                     + tm * tf * (8 + wi))
        weight_hbm_bytes = grid_m * 2 * d_model * f_pad * wi
        grid = (grid_m, f_pad // tf)
        in_specs = [
            _block_spec((tm, d_model), lambda i, k: (i, 0), buffers=1),    # x (resident over k)
            _block_spec((d_model, tf), lambda i, k: (0, k)),               # W1^T chunk
            _block_spec((tf, d_model), lambda i, k: (k, 0)),               # W2^T chunk
        ]
        out_specs = _block_spec((tm, d_model), lambda i, k: (i, 0), buffers=1)
        scratch_shapes = [pltpu.VMEM((tm, d_model), jnp.float32)]
        kernel = functools.partial(_ffn_streaming_kernel, precision=precision)
        dim_sem = ("parallel", "arbitrary")

    vmem_limit = int(min(vmem_cap, max(est_bytes + _HEADROOM, 32 * 1024 * 1024)))

    cost = pl.CostEstimate(
        flops=4 * m_pad * f_pad * d_model,           # two matmuls
        transcendentals=m_pad * f_pad,               # erf per hidden element
        bytes_accessed=m_pad * d_model * (xi + oi) + weight_hbm_bytes,
    )

    out2d = pl.pallas_call(
        kernel,
        out_shape=jax.ShapeDtypeStruct((m_pad, d_model), x.dtype),
        grid_spec=pltpu.PrefetchScalarGridSpec(
            num_scalar_prefetch=0,
            grid=grid,
            in_specs=in_specs,
            out_specs=out_specs,
            scratch_shapes=scratch_shapes,
        ),
        compiler_params=pltpu.CompilerParams(
            dimension_semantics=dim_sem,
            vmem_limit_bytes=vmem_limit,
        ),
        cost_estimate=cost,
    )(x2d, w1t, w2t)

    if m_pad != M:
        out2d = out2d[:M]
    return out2d.reshape(*lead, d_model)


def _reference(x, w1, w2):
    h = jnp.einsum("...d,fd->...f", x, w1, precision="highest")
    h = h * (0.5 * (1.0 + lax.erf(h / jnp.sqrt(2.0))))
    return jnp.einsum("...f,df->...d", h, w2, precision="highest")


if __name__ == "__main__":
    B, S, d_model, d_ff = 2, 8, 32, 64

    key = jax.random.PRNGKey(0)
    kx, k1, k2 = jax.random.split(key, 3)

    x = jax.random.normal(kx, (B, S, d_model), dtype=jnp.float32)
    # Deterministic init mimicking nn.Linear's uniform(-1/sqrt(fan_in), 1/sqrt(fan_in))
    w1 = jax.random.uniform(k1, (d_ff, d_model), dtype=jnp.float32,
                            minval=-1.0 / float(d_model) ** 0.5,
                            maxval=1.0 / float(d_model) ** 0.5)
    w2 = jax.random.uniform(k2, (d_model, d_ff), dtype=jnp.float32,
                            minval=-1.0 / float(d_ff) ** 0.5,
                            maxval=1.0 / float(d_ff) ** 0.5)

    ref = _reference(x, w1, w2)

    # Weights-resident (fast) path.
    out = jax.block_until_ready(feed_forward(x, w1, w2))
    assert out.shape == (B, S, d_model)
    assert jnp.allclose(out, ref, atol=1e-5, rtol=1e-5), \
        float(jnp.max(jnp.abs(out - ref)))

    # Streaming (d_ff-chunked) path, exercised explicitly at small size.
    out_s = jax.block_until_ready(feed_forward(x, w1, w2, _force_streaming=True))
    assert out_s.shape == (B, S, d_model)
    assert jnp.allclose(out_s, ref, atol=1e-5, rtol=1e-5), \
        float(jnp.max(jnp.abs(out_s - ref)))

    print("KERNEL_OK")
</pallas_src>

<mosaic_0001>
module attributes {stable_mosaic.version = 11 : i64} {
  func.func @_ffn_resident_kernel(%arg0: i32, %arg1: memref<16x32xf32, #tpu.memory_space<vmem>>, %arg2: memref<32x128xf32, #tpu.memory_space<vmem>>, %arg3: memref<128x32xf32, #tpu.memory_space<vmem>>, %arg4: memref<16x32xf32, #tpu.memory_space<vmem>>) attributes {dimension_semantics = [#tpu.dimension_semantics<parallel>], iteration_bounds = array<i64: 1>, scalar_prefetch = 0 : i64, scratch_operands = 0 : i64, tpu.core_type = #tpu.core_type<tc>, window_params = [{transform_indices = @transform_0, window_bounds = array<i64: 16, 32>}, {pipeline_mode = #tpu.pipeline_mode<synchronous>, transform_indices = @transform_1, window_bounds = array<i64: 32, 128>}, {pipeline_mode = #tpu.pipeline_mode<synchronous>, transform_indices = @transform_2, window_bounds = array<i64: 128, 32>}, {transform_indices = @transform_3, window_bounds = array<i64: 16, 32>}]} {
    %c0 = arith.constant 0 : index
    %c0_0 = arith.constant 0 : index
    %0 = vector.load %arg1[%c0, %c0_0] : memref<16x32xf32, #tpu.memory_space<vmem>>, vector<16x32xf32>
    %c0_1 = arith.constant 0 : index
    %c0_2 = arith.constant 0 : index
    %1 = vector.load %arg2[%c0_1, %c0_2] : memref<32x128xf32, #tpu.memory_space<vmem>>, vector<32x128xf32>
    %cst = arith.constant dense<0.000000e+00> : vector<16x128xf32>
    %2 = tpu.matmul %0, %1, %cst {dimension_numbers = #tpu.dot_dimension_numbers<[1], [0], [0], [1], [0, 0, 1, 1], [], []>, precision = #tpu.contract_precision<fp32>} : vector<16x32xf32>, vector<32x128xf32>, vector<16x128xf32> -> vector<16x128xf32>
    %cst_3 = arith.constant 0.707106769 : f32
    %3 = vector.broadcast %cst_3 : f32 to vector<16x128xf32>
    %4 = arith.mulf %2, %3 : vector<16x128xf32>
    %5 = math.erf %4 : vector<16x128xf32>
    %cst_4 = arith.constant 1.000000e+00 : f32
    %6 = vector.broadcast %cst_4 : f32 to vector<16x128xf32>
    %7 = arith.addf %6, %5 : vector<16x128xf32>
    %cst_5 = arith.constant 5.000000e-01 : f32
    %8 = vector.broadcast %cst_5 : f32 to vector<16x128xf32>
    %9 = arith.mulf %8, %7 : vector<16x128xf32>
    %10 = arith.mulf %2, %9 : vector<16x128xf32>
    %c0_6 = arith.constant 0 : index
    %c0_7 = arith.constant 0 : index
    %11 = vector.load %arg3[%c0_6, %c0_7] : memref<128x32xf32, #tpu.memory_space<vmem>>, vector<128x32xf32>
    %cst_8 = arith.constant dense<0.000000e+00> : vector<16x32xf32>
    %12 = tpu.matmul %10, %11, %cst_8 {dimension_numbers = #tpu.dot_dimension_numbers<[1], [0], [0], [1], [0, 0, 1, 1], [], []>, precision = #tpu.contract_precision<fp32>} : vector<16x128xf32>, vector<128x32xf32>, vector<16x32xf32> -> vector<16x32xf32>
    %c0_9 = arith.constant 0 : index
    %c0_10 = arith.constant 0 : index
    %13 = vector.load %arg4[%c0_9, %c0_10] : memref<16x32xf32, #tpu.memory_space<vmem>>, vector<16x32xf32>
    tpu.vector_store %arg4[%c0_9, %c0_10], %12 {strides = array<i32>} : memref<16x32xf32, #tpu.memory_space<vmem>>, vector<16x32xf32>,
    return
  }
  func.func @transform_0(%arg0: i32) -> (i32, i32) {
    %c0_i32 = arith.constant 0 : i32
    %c0_i32_0 = arith.constant 0 : i32
    return %arg0, %c0_i32 : i32, i32
  }
  func.func @transform_1(%arg0: i32) -> (i32, i32) {
    %c0_i32 = arith.constant 0 : i32
    %c0_i32_0 = arith.constant 0 : i32
    %c0_i32_1 = arith.constant 0 : i32
    return %c0_i32, %c0_i32_0 : i32, i32
  }
  func.func @transform_2(%arg0: i32) -> (i32, i32) {
    %c0_i32 = arith.constant 0 : i32
    %c0_i32_0 = arith.constant 0 : i32
    %c0_i32_1 = arith.constant 0 : i32
    return %c0_i32, %c0_i32_0 : i32, i32
  }
  func.func @transform_3(%arg0: i32) -> (i32, i32) {
    %c0_i32 = arith.constant 0 : i32
    %c0_i32_0 = arith.constant 0 : i32
    return %arg0, %c0_i32 : i32, i32
  }
}

</mosaic_0001>

<llo_original>
// kernel: feed_forward.1
$region0: #{feed_forward.1}
  #allocation0 [shape = 'u32[]', space=smem, size = 0x4, offset = 0x4, fixed_abs, tag = 'smem constant byte address 0x4 - core index']
  #allocation1 [shape = 'u32[72,128]{1,0:T(1,128)}', space=vmem, size = 0x9000, scoped, tag = 'internal scratch']
  %s0 = inlined_call_operand.vmem [shape: f32[16,32], index: 0, kind: input, shape index: {}]
  %s1 = inlined_call_operand.vmem [shape: f32[32,128], index: 1, kind: input, shape index: {}]
  %s2 = inlined_call_operand.vmem [shape: f32[128,32], index: 2, kind: input, shape index: {}]
  %s3 = inlined_call_operand.hbm [shape: f32[16,32], index: 3, kind: output, shape index: {}]
  %s4 = sld [smem:[#allocation0]]
  $region22: #{feed_forward.1} parent=0
    _
  %s6 = ssub.s32 1, %s4
  %s7 = scalar_select 0, %s6, %s4
  $region1: #{feed_forward.1} parent=0
    #allocation2 [shape = 'u8[8192]{0}', space=vmem, size = 0x2000, scoped, tag = 'output window, operand 0, single buffered']
    #allocation3 [shape = 's32[1]{0}', space=sflag, size = 0x4, scoped, tag = 'scoped memory for feed_forward.1']
    %8 = vsyncpa [#allocation3], 0
    // Predicated region
    $region2: #{feed_forward.1} parent=1 // pred_check
      _
    $region3: #{feed_forward.1} parent=1 // pred_check_branch
      %10 = sbr.rel (0) target = $region5
    $region4: #{feed_forward.1} parent=1 // pred_region
      _
    $region5: #{feed_forward.1} parent=1 // pred_fallthru
      _
    // Predicated region
    $region6: #{feed_forward.1} parent=1 // pred_check
      _
    $region7: #{feed_forward.1} parent=1 // pred_check_branch
      %12 = sbr.rel (0) target = $region9
    $region8: #{feed_forward.1} parent=1 // pred_region
      _
    $region9: #{feed_forward.1} parent=1 // pred_fallthru
      _
    // Predicated region
    $region10: #{feed_forward.1} parent=1 // pred_check
      _
    $region11: #{feed_forward.1} parent=1 // pred_check_branch
      %14 = sbr.rel (0) target = $region13
    $region12: #{feed_forward.1} parent=1 // pred_region
      _
    $region13: #{feed_forward.1} parent=1 // pred_fallthru
      _
    %v15 = vld [vmem:[%s0] sm:$0xff]
    %v16 = vld [vmem:[%s0 + $0x8] sm:$0xff]
    %v17 = vld [vmem:[%s1] sm:$0xff]
    %v18 = vld [vmem:[%s1 + $0x8] sm:$0xff]
    %v19 = vld [vmem:[%s1 + $0x10] sm:$0xff]
    %v20 = vld [vmem:[%s1 + $0x18] sm:$0xff]
    %vm21 = vcmask 261120
    %v23 = vsel %vm21, %v15, 0
    %v26 = vsel %vm21, %v16, 0
    %28 = vmatpush.msra.mxu0 0.0
    %29 = vmatpush.msra.mxu0 0.0
    %30 = vmatpush.msra.mxu0 0.0
    %31 = vmatpush.msra.mxu0 0.0
    %32 = vmatpush.msra.mxu0 0.0
    %33 = vmatpush.msra.mxu0 0.0
    %34 = vmatpush.msra.mxu0 0.0
    %35 = vmatpush.msra.mxu0 0.0
    %36 = vmatpush.msra.mxu0 0.0
    %37 = vmatpush.msra.mxu0 0.0
    %38 = vmatpush.msra.mxu0 0.0
    %39 = vmatpush.msra.mxu0 0.0
    %v40 = vand.u32 %v20, 4294901760
    %41 = vmatpush.msra.mxu0 %v40
    %v42 = vand.u32 %v19, 4294901760
    %43 = vmatpush.msra.mxu0 %v42
    %v44 = vand.u32 %v18, 4294901760
    %45 = vmatpush.msra.mxu0 %v44
    %v46 = vand.u32 %v17, 4294901760
    %47 = vmatpush.msra.mxu0 %v46
    %v48 = vand.u32 %v23, 4294901760
    %v49 = vsub.f32 %v23, %v48
    %v50 = vand.u32 %v49, 4294901760
    %v51 = vsub.f32 %v49, %v50
    %v52 = vand.u32 %v51, 4294901760
    %53 = vmatmul.f32.gmra.mxu0 %v52
    %v54 = vpop.f32.mrf.mxu0
    %v55 = vadd.f32 0.0, %v54
    %v56 = vand.u32 %v26, 4294901760
    %v57 = vsub.f32 %v26, %v56
    %v58 = vand.u32 %v57, 4294901760
    %v59 = vsub.f32 %v57, %v58
    %v60 = vand.u32 %v59, 4294901760
    %61 = vmatmul.f32.gmra.mxu0 %v60
    %v62 = vpop.f32.mrf.mxu0
    %v63 = vadd.f32 0.0, %v62
    %64 = vdwg.mxu0
    %65 = vmatpush.msra.mxu0 0.0
    %66 = vmatpush.msra.mxu0 0.0
    %67 = vmatpush.msra.mxu0 0.0
    %68 = vmatpush.msra.mxu0 0.0
    %69 = vmatpush.msra.mxu0 0.0
    %70 = vmatpush.msra.mxu0 0.0
    %71 = vmatpush.msra.mxu0 0.0
    %72 = vmatpush.msra.mxu0 0.0
    %73 = vmatpush.msra.mxu0 0.0
    %74 = vmatpush.msra.mxu0 0.0
    %75 = vmatpush.msra.mxu0 0.0
    %76 = vmatpush.msra.mxu0 0.0
    %v77 = vand.u32 %v20, 4294901760
    %v78 = vsub.f32 %v20, %v77
    %v79 = vand.u32 %v78, 4294901760
    %v80 = vsub.f32 %v78, %v79
    %v81 = vand.u32 %v80, 4294901760
    %82 = vmatpush.msra.mxu0 %v81
    %v83 = vand.u32 %v19, 4294901760
    %v84 = vsub.f32 %v19, %v83
    %v85 = vand.u32 %v84, 4294901760
    %v86 = vsub.f32 %v84, %v85
    %v87 = vand.u32 %v86, 4294901760
    %88 = vmatpush.msra.mxu0 %v87
    %v89 = vand.u32 %v18, 4294901760
    %v90 = vsub.f32 %v18, %v89
    %v91 = vand.u32 %v90, 4294901760
    %v92 = vsub.f32 %v90, %v91
    %v93 = vand.u32 %v92, 4294901760
    %94 = vmatpush.msra.mxu0 %v93
    %v95 = vand.u32 %v17, 4294901760
    %v96 = vsub.f32 %v17, %v95
    %v97 = vand.u32 %v96, 4294901760
    %v98 = vsub.f32 %v96, %v97
    %v99 = vand.u32 %v98, 4294901760
    %100 = vmatpush.msra.mxu0 %v99
    %v101 = vand.u32 %v23, 4294901760
    %102 = vmatmul.f32.gmra.mxu0 %v101
    %v103 = vpop.f32.mrf.mxu0
    %v104 = vadd.f32 %v55, %v103
    %v105 = vand.u32 %v26, 4294901760
    %106 = vmatmul.f32.gmra.mxu0 %v105
    %v107 = vpop.f32.mrf.mxu0
    %v108 = vadd.f32 %v63, %v107
    %109 = vdwg.mxu0
    %110 = vmatpush.msra.mxu0 0.0
    %111 = vmatpush.msra.mxu0 0.0
    %112 = vmatpush.msra.mxu0 0.0
    %113 = vmatpush.msra.mxu0 0.0
    %114 = vmatpush.msra.mxu0 0.0
    %115 = vmatpush.msra.mxu0 0.0
    %116 = vmatpush.msra.mxu0 0.0
    %117 = vmatpush.msra.mxu0 0.0
    %118 = vmatpush.msra.mxu0 0.0
    %119 = vmatpush.msra.mxu0 0.0
    %120 = vmatpush.msra.mxu0 0.0
    %121 = vmatpush.msra.mxu0 0.0
    %v122 = vand.u32 %v20, 4294901760
    %v123 = vsub.f32 %v20, %v122
    %124 = vmatpush.msra.mxu0 %v123
    %v125 = vand.u32 %v19, 4294901760
    %v126 = vsub.f32 %v19, %v125
    %127 = vmatpush.msra.mxu0 %v126
    %v128 = vand.u32 %v18, 4294901760
    %v129 = vsub.f32 %v18, %v128
    %130 = vmatpush.msra.mxu0 %v129
    %v131 = vand.u32 %v17, 4294901760
    %v132 = vsub.f32 %v17, %v131
    %133 = vmatpush.msra.mxu0 %v132
    %v134 = vand.u32 %v23, 4294901760
    %v135 = vsub.f32 %v23, %v134
    %136 = vmatmul.f32.gmra.mxu0 %v135
    %v137 = vpop.f32.mrf.mxu0
    %v138 = vadd.f32 %v104, %v137
    %v139 = vand.u32 %v26, 4294901760
    %v140 = vsub.f32 %v26, %v139
    %141 = vmatmul.f32.gmra.mxu0 %v140
    %v142 = vpop.f32.mrf.mxu0
    %v143 = vadd.f32 %v108, %v142
    %144 = vdwg.mxu0
    %145 = vmatpush.msra.mxu0 0.0
    %146 = vmatpush.msra.mxu0 0.0
    %147 = vmatpush.msra.mxu0 0.0
    %148 = vmatpush.msra.mxu0 0.0
    %149 = vmatpush.msra.mxu0 0.0
    %150 = vmatpush.msra.mxu0 0.0
    %151 = vmatpush.msra.mxu0 0.0
    %152 = vmatpush.msra.mxu0 0.0
    %153 = vmatpush.msra.mxu0 0.0
    %154 = vmatpush.msra.mxu0 0.0
    %155 = vmatpush.msra.mxu0 0.0
    %156 = vmatpush.msra.mxu0 0.0
    %v157 = vand.u32 %v20, 4294901760
    %158 = vmatpush.msra.mxu0 %v157
    %v159 = vand.u32 %v19, 4294901760
    %160 = vmatpush.msra.mxu0 %v159
    %v161 = vand.u32 %v18, 4294901760
    %162 = vmatpush.msra.mxu0 %v161
    %v163 = vand.u32 %v17, 4294901760
    %164 = vmatpush.msra.mxu0 %v163
    %v165 = vand.u32 %v23, 4294901760
    %v166 = vsub.f32 %v23, %v165
    %v167 = vand.u32 %v166, 4294901760
    %168 = vmatmul.f32.gmra.mxu0 %v167
    %v169 = vpop.f32.mrf.mxu0
    %v170 = vadd.f32 %v138, %v169
    %v171 = vand.u32 %v26, 4294901760
    %v172 = vsub.f32 %v26, %v171
    %v173 = vand.u32 %v172, 4294901760
    %174 = vmatmul.f32.gmra.mxu0 %v173
    %v175 = vpop.f32.mrf.mxu0
    %v176 = vadd.f32 %v143, %v175
    %177 = vdwg.mxu0
    %178 = vmatpush.msra.mxu0 0.0
    %179 = vmatpush.msra.mxu0 0.0
    %180 = vmatpush.msra.mxu0 0.0
    %181 = vmatpush.msra.mxu0 0.0
    %182 = vmatpush.msra.mxu0 0.0
    %183 = vmatpush.msra.mxu0 0.0
    %184 = vmatpush.msra.mxu0 0.0
    %185 = vmatpush.msra.mxu0 0.0
    %186 = vmatpush.msra.mxu0 0.0
    %187 = vmatpush.msra.mxu0 0.0
    %188 = vmatpush.msra.mxu0 0.0
    %189 = vmatpush.msra.mxu0 0.0
    %v190 = vand.u32 %v20, 4294901760
    %v191 = vsub.f32 %v20, %v190
    %v192 = vand.u32 %v191, 4294901760
    %193 = vmatpush.msra.mxu0 %v192
    %v194 = vand.u32 %v19, 4294901760
    %v195 = vsub.f32 %v19, %v194
    %v196 = vand.u32 %v195, 4294901760
    %197 = vmatpush.msra.mxu0 %v196
    %v198 = vand.u32 %v18, 4294901760
    %v199 = vsub.f32 %v18, %v198
    %v200 = vand.u32 %v199, 4294901760
    %201 = vmatpush.msra.mxu0 %v200
    %v202 = vand.u32 %v17, 4294901760
    %v203 = vsub.f32 %v17, %v202
    %v204 = vand.u32 %v203, 4294901760
    %205 = vmatpush.msra.mxu0 %v204
    %v206 = vand.u32 %v23, 4294901760
    %207 = vmatmul.f32.gmra.mxu0 %v206
    %v208 = vpop.f32.mrf.mxu0
    %v209 = vadd.f32 %v170, %v208
    %v210 = vand.u32 %v26, 4294901760
    %211 = vmatmul.f32.gmra.mxu0 %v210
    %v212 = vpop.f32.mrf.mxu0
    %v213 = vadd.f32 %v176, %v212
    %214 = vdwg.mxu0
    %215 = vmatpush.msra.mxu0 0.0
    %216 = vmatpush.msra.mxu0 0.0
    %217 = vmatpush.msra.mxu0 0.0
    %218 = vmatpush.msra.mxu0 0.0
    %219 = vmatpush.msra.mxu0 0.0
    %220 = vmatpush.msra.mxu0 0.0
    %221 = vmatpush.msra.mxu0 0.0
    %222 = vmatpush.msra.mxu0 0.0
    %223 = vmatpush.msra.mxu0 0.0
    %224 = vmatpush.msra.mxu0 0.0
    %225 = vmatpush.msra.mxu0 0.0
    %226 = vmatpush.msra.mxu0 0.0
    %v227 = vand.u32 %v20, 4294901760
    %228 = vmatpush.msra.mxu0 %v227
    %v229 = vand.u32 %v19, 4294901760
    %230 = vmatpush.msra.mxu0 %v229
    %v231 = vand.u32 %v18, 4294901760
    %232 = vmatpush.msra.mxu0 %v231
    %v233 = vand.u32 %v17, 4294901760
    %234 = vmatpush.msra.mxu0 %v233
    %v235 = vand.u32 %v23, 4294901760
    %236 = vmatmul.f32.gmra.mxu0 %v235
    %v237 = vpop.f32.mrf.mxu0
    %v238 = vadd.f32 %v209, %v237
    %v239 = vand.u32 %v26, 4294901760
    %240 = vmatmul.f32.gmra.mxu0 %v239
    %v241 = vpop.f32.mrf.mxu0
    %v242 = vadd.f32 %v213, %v241
    %243 = vdwg.mxu0
    %v244 = vmul.f32 %v238, 0.70710677
    %v245 = vmul.f32 %v242, 0.70710677
    %v246 = vmul.f32 %v244, %v244
    %v247 = vmin.f32 16.0, %v246
    %v248 = vmul.f32 %v247, 2.1237322e-06
    %v249 = vadd.f32 %v248, 0.00028619796
    %v250 = vmul.f32 %v247, %v249
    %v251 = vadd.f32 %v250, 0.0036580483
    %v252 = vmul.f32 %v247, %v251
    %v253 = vadd.f32 %v252, 0.05243302
    %v254 = vmul.f32 %v247, %v253
    %v255 = vadd.f32 %v254, 0.18741608
    %v256 = vmul.f32 %v247, %v255
    %v257 = vadd.f32 %v256, 1.1283791
    %v258 = vmul.f32 %v244, %v257
    %v259 = vmul.f32 %v247, 3.8918573e-05
    %v260 = vadd.f32 %v259, 0.001143296
    %v261 = vmul.f32 %v247, %v260
    %v262 = vadd.f32 %v261, 0.014752088
    %v263 = vmul.f32 %v247, %v262
    %v264 = vadd.f32 %v263, 0.112945676
    %v265 = vmul.f32 %v247, %v264
    %v266 = vadd.f32 %v265, 0.4994258
    %v267 = vmul.f32 %v247, %v266
    %v268 = vadd.f32 %v267, 1.0
    %v269 = vrcp.pop %v268
    %v270 = vmul.f32 %v268, %v269
    %v271 = vsub.f32 1.0, %v270
    %v272 = vmul.f32 %v269, %v271
    %v273 = vadd.f32 %v269, %v272
    %vm274 = vweird.f32 %v268
    %vm275 = vweird.f32 %v269
    %vm276 = vmor %vm274, %vm275
    %v277 = vsel %vm276, %v269, %v273
    %v278 = vand.u32 2147483647, %v268
    %vm279 = vcmp.eq.f32.partialorder %v278, 8.507059e+37
    %v280 = vand.u32 %v268, 2147483648
    %v281 = vor.u32 1.1754944e-38, %v280
    %v282 = vsel %vm279, %v281, %v277
    %v283 = vmul.f32 %v258, %v282
    %v284 = vmin.f32 %v283, 1.0
    %v285 = vmax.f32 %v284, -1.0
    %v286 = vmul.f32 %v245, %v245
    %v287 = vmin.f32 16.0, %v286
    %v288 = vmul.f32 %v287, 2.1237322e-06
    %v289 = vadd.f32 %v288, 0.00028619796
    %v290 = vmul.f32 %v287, %v289
    %v291 = vadd.f32 %v290, 0.0036580483
    %v292 = vmul.f32 %v287, %v291
    %v293 = vadd.f32 %v292, 0.05243302
    %v294 = vmul.f32 %v287, %v293
    %v295 = vadd.f32 %v294, 0.18741608
    %v296 = vmul.f32 %v287, %v295
    %v297 = vadd.f32 %v296, 1.1283791
    %v298 = vmul.f32 %v245, %v297
    %v299 = vmul.f32 %v287, 3.8918573e-05
    %v300 = vadd.f32 %v299, 0.001143296
    %v301 = vmul.f32 %v287, %v300
    %v302 = vadd.f32 %v301, 0.014752088
    %v303 = vmul.f32 %v287, %v302
    %v304 = vadd.f32 %v303, 0.112945676
    %v305 = vmul.f32 %v287, %v304
    %v306 = vadd.f32 %v305, 0.4994258
    %v307 = vmul.f32 %v287, %v306
    %v308 = vadd.f32 %v307, 1.0
    %v309 = vrcp.pop %v308
    %v310 = vmul.f32 %v308, %v309
    %v311 = vsub.f32 1.0, %v310
    %v312 = vmul.f32 %v309, %v311
    %v313 = vadd.f32 %v309, %v312
    %vm314 = vweird.f32 %v308
    %vm315 = vweird.f32 %v309
    %vm316 = vmor %vm314, %vm315
    %v317 = vsel %vm316, %v309, %v313
    %v318 = vand.u32 2147483647, %v308
    %vm319 = vcmp.eq.f32.partialorder %v318, 8.507059e+37
    %v320 = vand.u32 %v308, 2147483648
    %v321 = vor.u32 1.1754944e-38, %v320
    %v322 = vsel %vm319, %v321, %v317
    %v323 = vmul.f32 %v298, %v322
    %v324 = vmin.f32 %v323, 1.0
    %v325 = vmax.f32 %v324, -1.0
    %v326 = vadd.f32 %v285, 1.0
    %v327 = vadd.f32 %v325, 1.0
    %v328 = vmul.f32 %v326, 0.5
    %v329 = vmul.f32 %v327, 0.5
    %v330 = vmul.f32 %v238, %v328
    %v331 = vmul.f32 %v242, %v329
    %v332 = vld [vmem:[%s2] sm:$0xff]
    %v333 = vld [vmem:[%s2 + $0x8] sm:$0xff]
    %v334 = vld [vmem:[%s2 + $0x10] sm:$0xff]
    %v335 = vld [vmem:[%s2 + $0x18] sm:$0xff]
    %v336 = vld [vmem:[%s2 + $0x20] sm:$0xff]
    %v337 = vld [vmem:[%s2 + $0x28] sm:$0xff]
    %v338 = vld [vmem:[%s2 + $0x30] sm:$0xff]
    %v339 = vld [vmem:[%s2 + $0x38] sm:$0xff]
    %v340 = vld [vmem:[%s2 + $0x40] sm:$0xff]
    %v341 = vld [vmem:[%s2 + $0x48] sm:$0xff]
    %v342 = vld [vmem:[%s2 + $0x50] sm:$0xff]
    %v343 = vld [vmem:[%s2 + $0x58] sm:$0xff]
    %v344 = vld [vmem:[%s2 + $0x60] sm:$0xff]
    %v345 = vld [vmem:[%s2 + $0x68] sm:$0xff]
    %v346 = vld [vmem:[%s2 + $0x70] sm:$0xff]
    %v347 = vld [vmem:[%s2 + $0x78] sm:$0xff]
    %v348 = vand.u32 %v347, 4294901760
    %349 = vmatpush.msra.mxu0 %v348
    %v350 = vand.u32 %v346, 4294901760
    %351 = vmatpush.msra.mxu0 %v350
    %v352 = vand.u32 %v345, 4294901760
    %353 = vmatpush.msra.mxu0 %v352
    %v354 = vand.u32 %v344, 4294901760
    %355 = vmatpush.msra.mxu0 %v354
    %v356 = vand.u32 %v343, 4294901760
    %357 = vmatpush.msra.mxu0 %v356
    %v358 = vand.u32 %v342, 4294901760
    %359 = vmatpush.msra.mxu0 %v358
    %v360 = vand.u32 %v341, 4294901760
    %361 = vmatpush.msra.mxu0 %v360
    %v362 = vand.u32 %v340, 4294901760
    %363 = vmatpush.msra.mxu0 %v362
    %v364 = vand.u32 %v339, 4294901760
    %365 = vmatpush.msra.mxu0 %v364
    %v366 = vand.u32 %v338, 4294901760
    %367 = vmatpush.msra.mxu0 %v366
    %v368 = vand.u32 %v337, 4294901760
    %369 = vmatpush.msra.mxu0 %v368
    %v370 = vand.u32 %v336, 4294901760
    %371 = vmatpush.msra.mxu0 %v370
    %v372 = vand.u32 %v335, 4294901760
    %373 = vmatpush.msra.mxu0 %v372
    %v374 = vand.u32 %v334, 4294901760
    %375 = vmatpush.msra.mxu0 %v374
    %v376 = vand.u32 %v333, 4294901760
    %377 = vmatpush.msra.mxu0 %v376
    %v378 = vand.u32 %v332, 4294901760
    %379 = vmatpush.msra.mxu0 %v378
    %v380 = vand.u32 %v330, 4294901760
    %v381 = vsub.f32 %v330, %v380
    %v382 = vand.u32 %v381, 4294901760
    %v383 = vsub.f32 %v381, %v382
    %v384 = vand.u32 %v383, 4294901760
    %385 = vmatmul.f32.gmra.mxu0 %v384
    %v386 = vpop.f32.mrf.mxu0
    %v387 = vadd.f32 0.0, %v386
    %v388 = vand.u32 %v331, 4294901760
    %v389 = vsub.f32 %v331, %v388
    %v390 = vand.u32 %v389, 4294901760
    %v391 = vsub.f32 %v389, %v390
    %v392 = vand.u32 %v391, 4294901760
    %393 = vmatmul.f32.gmra.mxu0 %v392
    %v394 = vpop.f32.mrf.mxu0
    %v395 = vadd.f32 0.0, %v394
    %396 = vdwg.mxu0
    %v397 = vand.u32 %v347, 4294901760
    %v398 = vsub.f32 %v347, %v397
    %v399 = vand.u32 %v398, 4294901760
    %v400 = vsub.f32 %v398, %v399
    %v401 = vand.u32 %v400, 4294901760
    %402 = vmatpush.msra.mxu0 %v401
    %v403 = vand.u32 %v346, 4294901760
    %v404 = vsub.f32 %v346, %v403
    %v405 = vand.u32 %v404, 4294901760
    %v406 = vsub.f32 %v404, %v405
    %v407 = vand.u32 %v406, 4294901760
    %408 = vmatpush.msra.mxu0 %v407
    %v409 = vand.u32 %v345, 4294901760
    %v410 = vsub.f32 %v345, %v409
    %v411 = vand.u32 %v410, 4294901760
    %v412 = vsub.f32 %v410, %v411
    %v413 = vand.u32 %v412, 4294901760
    %414 = vmatpush.msra.mxu0 %v413
    %v415 = vand.u32 %v344, 4294901760
    %v416 = vsub.f32 %v344, %v415
    %v417 = vand.u32 %v416, 4294901760
    %v418 = vsub.f32 %v416, %v417
    %v419 = vand.u32 %v418, 4294901760
    %420 = vmatpush.msra.mxu0 %v419
    %v421 = vand.u32 %v343, 4294901760
    %v422 = vsub.f32 %v343, %v421
    %v423 = vand.u32 %v422, 4294901760
    %v424 = vsub.f32 %v422, %v423
    %v425 = vand.u32 %v424, 4294901760
    %426 = vmatpush.msra.mxu0 %v425
    %v427 = vand.u32 %v342, 4294901760
    %v428 = vsub.f32 %v342, %v427
    %v429 = vand.u32 %v428, 4294901760
    %v430 = vsub.f32 %v428, %v429
    %v431 = vand.u32 %v430, 4294901760
    %432 = vmatpush.msra.mxu0 %v431
    %v433 = vand.u32 %v341, 4294901760
    %v434 = vsub.f32 %v341, %v433
    %v435 = vand.u32 %v434, 4294901760
    %v436 = vsub.f32 %v434, %v435
    %v437 = vand.u32 %v436, 4294901760
    %438 = vmatpush.msra.mxu0 %v437
    %v439 = vand.u32 %v340, 4294901760
    %v440 = vsub.f32 %v340, %v439
    %v441 = vand.u32 %v440, 4294901760
    %v442 = vsub.f32 %v440, %v441
    %v443 = vand.u32 %v442, 4294901760
    %444 = vmatpush.msra.mxu0 %v443
    %v445 = vand.u32 %v339, 4294901760
    %v446 = vsub.f32 %v339, %v445
    %v447 = vand.u32 %v446, 4294901760
    %v448 = vsub.f32 %v446, %v447
    %v449 = vand.u32 %v448, 4294901760
    %450 = vmatpush.msra.mxu0 %v449
    %v451 = vand.u32 %v338, 4294901760
    %v452 = vsub.f32 %v338, %v451
    %v453 = vand.u32 %v452, 4294901760
    %v454 = vsub.f32 %v452, %v453
    %v455 = vand.u32 %v454, 4294901760
    %456 = vmatpush.msra.mxu0 %v455
    %v457 = vand.u32 %v337, 4294901760
    %v458 = vsub.f32 %v337, %v457
    %v459 = vand.u32 %v458, 4294901760
    %v460 = vsub.f32 %v458, %v459
    %v461 = vand.u32 %v460, 4294901760
    %462 = vmatpush.msra.mxu0 %v461
    %v463 = vand.u32 %v336, 4294901760
    %v464 = vsub.f32 %v336, %v463
    %v465 = vand.u32 %v464, 4294901760
    %v466 = vsub.f32 %v464, %v465
    %v467 = vand.u32 %v466, 4294901760
    %468 = vmatpush.msra.mxu0 %v467
    %v469 = vand.u32 %v335, 4294901760
    %v470 = vsub.f32 %v335, %v469
    %v471 = vand.u32 %v470, 4294901760
    %v472 = vsub.f32 %v470, %v471
    %v473 = vand.u32 %v472, 4294901760
    %474 = vmatpush.msra.mxu0 %v473
    %v475 = vand.u32 %v334, 4294901760
    %v476 = vsub.f32 %v334, %v475
    %v477 = vand.u32 %v476, 4294901760
    %v478 = vsub.f32 %v476, %v477
    %v479 = vand.u32 %v478, 4294901760
    %480 = vmatpush.msra.mxu0 %v479
    %v481 = vand.u32 %v333, 4294901760
    %v482 = vsub.f32 %v333, %v481
    %v483 = vand.u32 %v482, 4294901760
    %v484 = vsub.f32 %v482, %v483
    %v485 = vand.u32 %v484, 4294901760
    %486 = vmatpush.msra.mxu0 %v485
    %v487 = vand.u32 %v332, 4294901760
    %v488 = vsub.f32 %v332, %v487
    %v489 = vand.u32 %v488, 4294901760
    %v490 = vsub.f32 %v488, %v489
    %v491 = vand.u32 %v490, 4294901760
    %492 = vmatpush.msra.mxu0 %v491
    %v493 = vand.u32 %v330, 4294901760
    %494 = vmatmul.f32.gmra.mxu0 %v493
    %v495 = vpop.f32.mrf.mxu0
    %v496 = vadd.f32 %v387, %v495
    %v497 = vand.u32 %v331, 4294901760
    %498 = vmatmul.f32.gmra.mxu0 %v497
    %v499 = vpop.f32.mrf.mxu0
    %v500 = vadd.f32 %v395, %v499
    %501 = vdwg.mxu0
    %v502 = vand.u32 %v347, 4294901760
    %v503 = vsub.f32 %v347, %v502
    %504 = vmatpush.msra.mxu0 %v503
    %v505 = vand.u32 %v346, 4294901760
    %v506 = vsub.f32 %v346, %v505
    %507 = vmatpush.msra.mxu0 %v506
    %v508 = vand.u32 %v345, 4294901760
    %v509 = vsub.f32 %v345, %v508
    %510 = vmatpush.msra.mxu0 %v509
    %v511 = vand.u32 %v344, 4294901760
    %v512 = vsub.f32 %v344, %v511
    %513 = vmatpush.msra.mxu0 %v512
    %v514 = vand.u32 %v343, 4294901760
    %v515 = vsub.f32 %v343, %v514
    %516 = vmatpush.msra.mxu0 %v515
    %v517 = vand.u32 %v342, 4294901760
    %v518 = vsub.f32 %v342, %v517
    %519 = vmatpush.msra.mxu0 %v518
    %v520 = vand.u32 %v341, 4294901760
    %v521 = vsub.f32 %v341, %v520
    %522 = vmatpush.msra.mxu0 %v521
    %v523 = vand.u32 %v340, 4294901760
    %v524 = vsub.f32 %v340, %v523
    %525 = vmatpush.msra.mxu0 %v524
    %v526 = vand.u32 %v339, 4294901760
    %v527 = vsub.f32 %v339, %v526
    %528 = vmatpush.msra.mxu0 %v527
    %v529 = vand.u32 %v338, 4294901760
    %v530 = vsub.f32 %v338, %v529
    %531 = vmatpush.msra.mxu0 %v530
    %v532 = vand.u32 %v337, 4294901760
    %v533 = vsub.f32 %v337, %v532
    %534 = vmatpush.msra.mxu0 %v533
    %v535 = vand.u32 %v336, 4294901760
    %v536 = vsub.f32 %v336, %v535
    %537 = vmatpush.msra.mxu0 %v536
    %v538 = vand.u32 %v335, 4294901760
    %v539 = vsub.f32 %v335, %v538
    %540 = vmatpush.msra.mxu0 %v539
    %v541 = vand.u32 %v334, 4294901760
    %v542 = vsub.f32 %v334, %v541
    %543 = vmatpush.msra.mxu0 %v542
    %v544 = vand.u32 %v333, 4294901760
    %v545 = vsub.f32 %v333, %v544
    %546 = vmatpush.msra.mxu0 %v545
    %v547 = vand.u32 %v332, 4294901760
    %v548 = vsub.f32 %v332, %v547
    %549 = vmatpush.msra.mxu0 %v548
    %v550 = vand.u32 %v330, 4294901760
    %v551 = vsub.f32 %v330, %v550
    %552 = vmatmul.f32.gmra.mxu0 %v551
    %v553 = vpop.f32.mrf.mxu0
    %v554 = vadd.f32 %v496, %v553
    %v555 = vand.u32 %v331, 4294901760
    %v556 = vsub.f32 %v331, %v555
    %557 = vmatmul.f32.gmra.mxu0 %v556
    %v558 = vpop.f32.mrf.mxu0
    %v559 = vadd.f32 %v500, %v558
    %560 = vdwg.mxu0
    %v561 = vand.u32 %v347, 4294901760
    %562 = vmatpush.msra.mxu0 %v561
    %v563 = vand.u32 %v346, 4294901760
    %564 = vmatpush.msra.mxu0 %v563
    %v565 = vand.u32 %v345, 4294901760
    %566 = vmatpush.msra.mxu0 %v565
    %v567 = vand.u32 %v344, 4294901760
    %568 = vmatpush.msra.mxu0 %v567
    %v569 = vand.u32 %v343, 4294901760
    %570 = vmatpush.msra.mxu0 %v569
    %v571 = vand.u32 %v342, 4294901760
    %572 = vmatpush.msra.mxu0 %v571
    %v573 = vand.u32 %v341, 4294901760
    %574 = vmatpush.msra.mxu0 %v573
    %v575 = vand.u32 %v340, 4294901760
    %576 = vmatpush.msra.mxu0 %v575
    %v577 = vand.u32 %v339, 4294901760
    %578 = vmatpush.msra.mxu0 %v577
    %v579 = vand.u32 %v338, 4294901760
    %580 = vmatpush.msra.mxu0 %v579
    %v581 = vand.u32 %v337, 4294901760
    %582 = vmatpush.msra.mxu0 %v581
    %v583 = vand.u32 %v336, 4294901760
    %584 = vmatpush.msra.mxu0 %v583
    %v585 = vand.u32 %v335, 4294901760
    %586 = vmatpush.msra.mxu0 %v585
    %v587 = vand.u32 %v334, 4294901760
    %588 = vmatpush.msra.mxu0 %v587
    %v589 = vand.u32 %v333, 4294901760
    %590 = vmatpush.msra.mxu0 %v589
    %v591 = vand.u32 %v332, 4294901760
    %592 = vmatpush.msra.mxu0 %v591
    %v593 = vand.u32 %v330, 4294901760
    %v594 = vsub.f32 %v330, %v593
    %v595 = vand.u32 %v594, 4294901760
    %596 = vmatmul.f32.gmra.mxu0 %v595
    %v597 = vpop.f32.mrf.mxu0
    %v598 = vadd.f32 %v554, %v597
    %v599 = vand.u32 %v331, 4294901760
    %v600 = vsub.f32 %v331, %v599
    %v601 = vand.u32 %v600, 4294901760
    %602 = vmatmul.f32.gmra.mxu0 %v601
    %v603 = vpop.f32.mrf.mxu0
    %v604 = vadd.f32 %v559, %v603
    %605 = vdwg.mxu0
    %v606 = vand.u32 %v347, 4294901760
    %v607 = vsub.f32 %v347, %v606
    %v608 = vand.u32 %v607, 4294901760
    %609 = vmatpush.msra.mxu0 %v608
    %v610 = vand.u32 %v346, 4294901760
    %v611 = vsub.f32 %v346, %v610
    %v612 = vand.u32 %v611, 4294901760
    %613 = vmatpush.msra.mxu0 %v612
    %v614 = vand.u32 %v345, 4294901760
    %v615 = vsub.f32 %v345, %v614
    %v616 = vand.u32 %v615, 4294901760
    %617 = vmatpush.msra.mxu0 %v616
    %v618 = vand.u32 %v344, 4294901760
    %v619 = vsub.f32 %v344, %v618
    %v620 = vand.u32 %v619, 4294901760
    %621 = vmatpush.msra.mxu0 %v620
    %v622 = vand.u32 %v343, 4294901760
    %v623 = vsub.f32 %v343, %v622
    %v624 = vand.u32 %v623, 4294901760
    %625 = vmatpush.msra.mxu0 %v624
    %v626 = vand.u32 %v342, 4294901760
    %v627 = vsub.f32 %v342, %v626
    %v628 = vand.u32 %v627, 4294901760
    %629 = vmatpush.msra.mxu0 %v628
    %v630 = vand.u32 %v341, 4294901760
    %v631 = vsub.f32 %v341, %v630
    %v632 = vand.u32 %v631, 4294901760
    %633 = vmatpush.msra.mxu0 %v632
    %v634 = vand.u32 %v340, 4294901760
    %v635 = vsub.f32 %v340, %v634
    %v636 = vand.u32 %v635, 4294901760
    %637 = vmatpush.msra.mxu0 %v636
    %v638 = vand.u32 %v339, 4294901760
    %v639 = vsub.f32 %v339, %v638
    %v640 = vand.u32 %v639, 4294901760
    %641 = vmatpush.msra.mxu0 %v640
    %v642 = vand.u32 %v338, 4294901760
    %v643 = vsub.f32 %v338, %v642
    %v644 = vand.u32 %v643, 4294901760
    %645 = vmatpush.msra.mxu0 %v644
    %v646 = vand.u32 %v337, 4294901760
    %v647 = vsub.f32 %v337, %v646
    %v648 = vand.u32 %v647, 4294901760
    %649 = vmatpush.msra.mxu0 %v648
    %v650 = vand.u32 %v336, 4294901760
    %v651 = vsub.f32 %v336, %v650
    %v652 = vand.u32 %v651, 4294901760
    %653 = vmatpush.msra.mxu0 %v652
    %v654 = vand.u32 %v335, 4294901760
    %v655 = vsub.f32 %v335, %v654
    %v656 = vand.u32 %v655, 4294901760
    %657 = vmatpush.msra.mxu0 %v656
    %v658 = vand.u32 %v334, 4294901760
    %v659 = vsub.f32 %v334, %v658
    %v660 = vand.u32 %v659, 4294901760
    %661 = vmatpush.msra.mxu0 %v660
    %v662 = vand.u32 %v333, 4294901760
    %v663 = vsub.f32 %v333, %v662
    %v664 = vand.u32 %v663, 4294901760
    %665 = vmatpush.msra.mxu0 %v664
    %v666 = vand.u32 %v332, 4294901760
    %v667 = vsub.f32 %v332, %v666
    %v668 = vand.u32 %v667, 4294901760
    %669 = vmatpush.msra.mxu0 %v668
    %v670 = vand.u32 %v330, 4294901760
    %671 = vmatmul.f32.gmra.mxu0 %v670
    %v672 = vpop.f32.mrf.mxu0
    %v673 = vadd.f32 %v598, %v672
    %v674 = vand.u32 %v331, 4294901760
    %675 = vmatmul.f32.gmra.mxu0 %v674
    %v676 = vpop.f32.mrf.mxu0
    %v677 = vadd.f32 %v604, %v676
    %678 = vdwg.mxu0
    %v679 = vand.u32 %v347, 4294901760
    %680 = vmatpush.msra.mxu0 %v679
    %v681 = vand.u32 %v346, 4294901760
    %682 = vmatpush.msra.mxu0 %v681
    %v683 = vand.u32 %v345, 4294901760
    %684 = vmatpush.msra.mxu0 %v683
    %v685 = vand.u32 %v344, 4294901760
    %686 = vmatpush.msra.mxu0 %v685
    %v687 = vand.u32 %v343, 4294901760
    %688 = vmatpush.msra.mxu0 %v687
    %v689 = vand.u32 %v342, 4294901760
    %690 = vmatpush.msra.mxu0 %v689
    %v691 = vand.u32 %v341, 4294901760
    %692 = vmatpush.msra.mxu0 %v691
    %v693 = vand.u32 %v340, 4294901760
    %694 = vmatpush.msra.mxu0 %v693
    %v695 = vand.u32 %v339, 4294901760
    %696 = vmatpush.msra.mxu0 %v695
    %v697 = vand.u32 %v338, 4294901760
    %698 = vmatpush.msra.mxu0 %v697
    %v699 = vand.u32 %v337, 4294901760
    %700 = vmatpush.msra.mxu0 %v699
    %v701 = vand.u32 %v336, 4294901760
    %702 = vmatpush.msra.mxu0 %v701
    %v703 = vand.u32 %v335, 4294901760
    %704 = vmatpush.msra.mxu0 %v703
    %v705 = vand.u32 %v334, 4294901760
    %706 = vmatpush.msra.mxu0 %v705
    %v707 = vand.u32 %v333, 4294901760
    %708 = vmatpush.msra.mxu0 %v707
    %v709 = vand.u32 %v332, 4294901760
    %710 = vmatpush.msra.mxu0 %v709
    %v711 = vand.u32 %v330, 4294901760
    %712 = vmatmul.f32.gmra.mxu0 %v711
    %v713 = vpop.f32.mrf.mxu0
    %v714 = vadd.f32 %v673, %v713
    %v715 = vand.u32 %v331, 4294901760
    %716 = vmatmul.f32.gmra.mxu0 %v715
    %v717 = vpop.f32.mrf.mxu0
    %v718 = vadd.f32 %v677, %v717
    %719 = vdwg.mxu0
    %720 = vst.msk [vmem:[#allocation2] sm:$0xff] %vm21, %v714
    %721 = vst.msk [vmem:[#allocation2 + $0x8] sm:$0xff] %vm21, %v718
    // Predicated region
    $region14: #{feed_forward.1} parent=1 // pred_check
      _
    $region15: #{feed_forward.1} parent=1 // pred_check_branch
      %723 = sbr.rel (0) target = $region17
    $region16: #{feed_forward.1} parent=1 // pred_region
      %725 = vsyncadd [#allocation3], 0
      %s726 = sshll.u32 [#allocation2], 4
      %s727 = int_to_ptr.vmem [resolvable:$true] %s726
      %s728 = sshll.u32 %s3, 4
      %s729 = int_to_ptr.hbm [resolvable:$true] %s728
      %734 = dma.vmem_to_hbm [thread:$0]  %s727, 256, %s729, [#allocation3], 128, 128, 8
    $region17: #{feed_forward.1} parent=1 // pred_fallthru
      _
    // Predicated region
    $region18: #{feed_forward.1} parent=1 // pred_check
      _
    $region19: #{feed_forward.1} parent=1 // pred_check_branch
      %736 = sbr.rel (0) target = $region21
    $region20: #{feed_forward.1} parent=1 // pred_region
      %738 = dma.done [#allocation3], 256
    $region21: #{feed_forward.1} parent=1 // pred_fallthru
      _
    %739 = vsyncpa [#allocation3], 1

</llo_original>
